<compile_context>
chip_gen: v5e
topology: v5e:2x2
jax: 0.10.0
libtpu: 0.0.40
codegen_flags: <defaults>
</compile_context>

<pallas_src>
import math
import functools

import jax
import jax.numpy as jnp
from jax.experimental import pallas as pl
from jax.experimental.pallas import tpu as pltpu


def tolen2tuple(x):
    if isinstance(x, (tuple, list)):
        assert len(x) == 2
        return tuple(x)
    return (x, x)


def _get_pad_shape(input_shape, kernel_size, stride, dilation):
    input_h, input_w = input_shape
    kernel_h, kernel_w = kernel_size
    stride_h, stride_w = stride
    dil_h, dil_w = dilation
    output_h = math.ceil(input_h / stride_h)
    output_w = math.ceil(input_w / stride_w)
    pad_h = max((output_h - 1) * stride_h + (kernel_h - 1) * dil_h + 1 - input_h, 0)
    pad_w = max((output_w - 1) * stride_w + (kernel_w - 1) * dil_w + 1 - input_w, 0)
    return pad_h, pad_w


def _tpu_vmem_and_cores():
    """(VMEM bytes per core, TensorCores per chip) with safe fallbacks."""
    vmem_cap = 64 * 1024 * 1024   # conservative default (v7x per-TC VMEM)
    num_cores = 1                 # v5e / v6e: single TensorCore per chip
    try:
        info = pltpu.get_tpu_info()
        vmem_cap = int(getattr(info, "vmem_capacity_bytes", vmem_cap))
        for name in ("num_cores", "num_tensorcores", "tensorcores_per_chip",
                     "cores_per_chip"):
            val = getattr(info, name, None)
            if val:
                num_cores = int(val)
                break
    except Exception:
        pass
    return vmem_cap, num_cores


def _pick_block_channels(nc, per_channel_bytes, budget_bytes, num_cores):
    """Channel-plane block size. Returns 0 if a single plane doesn't fit."""
    if per_channel_bytes > budget_bytes:
        return 0
    bc = max(1, budget_bytes // per_channel_bytes)
    bc = min(bc, nc)
    if num_cores > 1 and nc >= num_cores:
        # Multi-TC chips (v7x megacore): keep >= num_cores grid steps so every
        # TensorCore gets work under dimension_semantics="parallel".
        bc = min(bc, pl.cdiv(nc, num_cores))
    return int(bc)


def _xla_pad(x, pad_h, pad_w, off_h, off_w):
    return jnp.pad(x, ((0, 0), (0, 0),
                       (off_h, pad_h - off_h),
                       (off_w, pad_w - off_w)))


# ----------------------------- kernels ------------------------------------ #

def _pad_rows_flat_kernel(x_ref, o_ref, *, lead, interior):
    """pad_w == 0 path; H*W flattened into the lane dim.

    Output layout per channel plane: [lead zeros | interior (input) | trail zeros].
    One contiguous lane-dense interior store + at most two strip stores.
    """
    bc, flat_out = o_ref.shape
    dt = o_ref.dtype
    o_ref[:, lead:lead + interior] = x_ref[...]
    if lead > 0:                       # 'same' top rows
        o_ref[:, :lead] = jnp.zeros((bc, lead), dt)
    trail = flat_out - lead - interior
    if trail > 0:                      # bottom rows
        o_ref[:, lead + interior:] = jnp.zeros((bc, trail), dt)


def _pad_hw_kernel(x_ref, o_ref, *, top, bottom, left, right):
    """pad_w > 0 path (out_w >= 128): build the padded tile on the compute
    side (concatenate zeros) and write o_ref exactly once — a single
    full-tile, lane-dense store instead of thin masked strip stores."""
    bc, h, w = x_ref.shape
    dt = o_ref.dtype
    y = x_ref[...]
    if left or right:
        parts = []
        if left:
            parts.append(jnp.zeros((bc, h, left), dt))
        parts.append(y)
        if right:
            parts.append(jnp.zeros((bc, h, right), dt))
        y = jnp.concatenate(parts, axis=2)
    out_w = w + left + right
    if top or bottom:
        parts = []
        if top:
            parts.append(jnp.zeros((bc, top, out_w), dt))
        parts.append(y)
        if bottom:
            parts.append(jnp.zeros((bc, bottom, out_w), dt))
        y = jnp.concatenate(parts, axis=1)
    o_ref[...] = y


# ----------------------------- wrapper ------------------------------------ #

def adaptive_padding(x, kernel_size=1, stride=1, dilation=1, padding="corner",
                     min_lane_width=128):
    """Pallas implementation of AdaptivePadding.forward for NCHW input x."""
    assert padding in ("same", "corner")
    kernel_size = tolen2tuple(kernel_size)
    stride = tolen2tuple(stride)
    dilation = tolen2tuple(dilation)

    n, c, h, w = x.shape
    pad_h, pad_w = _get_pad_shape((h, w), kernel_size, stride, dilation)

    # No padding needed -> identity (skip the kernel entirely).
    if pad_h == 0 and pad_w == 0:
        return x

    out_h, out_w = h + pad_h, w + pad_w
    if padding == "corner":
        off_h, off_w = 0, 0
    else:  # 'same': F.pad left/top = pad // 2
        off_h, off_w = pad_h // 2, pad_w // 2

    nc = n * c
    itemsize = jnp.dtype(x.dtype).itemsize
    vmem_cap, num_cores = _tpu_vmem_and_cores()
    budget = int(0.4 * vmem_cap)        # per-grid-step working set (dbl-buffered in+out)
    vmem_limit = int(0.75 * vmem_cap)   # scoped VMEM limit for the kernel
    cost = pl.CostEstimate(
        flops=0, transcendentals=0,
        bytes_accessed=(nc * h * w + nc * out_h * out_w) * itemsize)
    cparams = pltpu.CompilerParams(
        dimension_semantics=("parallel",),
        vmem_limit_bytes=vmem_limit)

    if pad_w == 0:
        # ---- lane-dense path: only rows are padded; flatten H*W into lanes ----
        flat_in, flat_out = h * w, out_h * out_w
        per_ch = 2 * (flat_in + flat_out) * itemsize
        bc = _pick_block_channels(nc, per_ch, budget, num_cores)
        if 0 < bc < nc:
            # (8,128) rule: second-to-last block dim must be a multiple of 8
            # or equal the full array dim.
            bc = max(8, (bc // 8) * 8)
            if bc >= nc:
                bc = nc
        if bc == 0 or bc * per_ch > int(0.9 * vmem_limit):
            # TODO(synk): tile the flattened spatial dim for planes that exceed
            # the VMEM budget; fall back to XLA pad for now.
            return _xla_pad(x, pad_h, pad_w, off_h, off_w)

        kernel = functools.partial(
            _pad_rows_flat_kernel, lead=off_h * w, interior=flat_in)
        out = pl.pallas_call(
            kernel,
            out_shape=jax.ShapeDtypeStruct((nc, flat_out), x.dtype),
            grid_spec=pltpu.PrefetchScalarGridSpec(
                num_scalar_prefetch=0,
                grid=(pl.cdiv(nc, bc),),
                in_specs=[pl.BlockSpec((bc, flat_in), lambda i: (i, 0))],
                out_specs=pl.BlockSpec((bc, flat_out), lambda i: (i, 0)),
            ),
            compiler_params=cparams,
            cost_estimate=cost,
        )(x.reshape(nc, flat_in))
        return out.reshape(n, c, out_h, out_w)

    # ---- pad_w > 0 ----
    if out_w < min_lane_width:
        # Padded width < 128 lanes: every Pallas store would be a masked
        # vst.msk partial store; XLA's pad is the better tool here.
        return _xla_pad(x, pad_h, pad_w, off_h, off_w)

    per_ch = 2 * (h * w + out_h * out_w) * itemsize
    bc = _pick_block_channels(nc, per_ch, budget, num_cores)
    if bc == 0:
        # TODO(synk): add out_h tiling for planes that exceed the VMEM budget;
        # fall back to XLA pad for now.
        return _xla_pad(x, pad_h, pad_w, off_h, off_w)

    kernel = functools.partial(
        _pad_hw_kernel, top=off_h, bottom=pad_h - off_h,
        left=off_w, right=pad_w - off_w)
    out = pl.pallas_call(
        kernel,
        out_shape=jax.ShapeDtypeStruct((nc, out_h, out_w), x.dtype),
        grid_spec=pltpu.PrefetchScalarGridSpec(
            num_scalar_prefetch=0,
            grid=(pl.cdiv(nc, bc),),
            in_specs=[pl.BlockSpec((bc, h, w), lambda i: (i, 0, 0))],
            out_specs=pl.BlockSpec((bc, out_h, out_w), lambda i: (i, 0, 0)),
        ),
        compiler_params=cparams,
        cost_estimate=cost,
    )(x.reshape(nc, h, w))
    return out.reshape(n, c, out_h, out_w)


def adaptive_padding_ref(x, kernel_size=1, stride=1, dilation=1, padding="corner"):
    """Pure-JAX reference mirroring the PyTorch module."""
    kernel_size = tolen2tuple(kernel_size)
    stride = tolen2tuple(stride)
    dilation = tolen2tuple(dilation)
    h, w = x.shape[-2:]
    pad_h, pad_w = _get_pad_shape((h, w), kernel_size, stride, dilation)
    if pad_h > 0 or pad_w > 0:
        if padding == "corner":
            pads = [(0, 0), (0, 0), (0, pad_h), (0, pad_w)]
        else:
            pads = [(0, 0), (0, 0),
                    (pad_h // 2, pad_h - pad_h // 2),
                    (pad_w // 2, pad_w - pad_w // 2)]
        x = jnp.pad(x, pads)
    return x


if __name__ == "__main__":
    key = jax.random.PRNGKey(0)
    k1, k2 = jax.random.split(key)
    # Small NCHW input: batch=2, channels=4, spatial=16x16.
    x_small = jax.random.normal(k1, (2, 4, 16, 16), dtype=jnp.float32)
    # Wider input so the padded width is lane-dense (>= 128) for the H,W path.
    x_wide = jax.random.normal(k2, (1, 2, 40, 130), dtype=jnp.float32)

    cases = [
        # no-pad identity short-circuit
        (x_small, dict(kernel_size=1, stride=1, dilation=1, padding="corner")),
        # narrow padded width (19 lanes) -> XLA fallback per perf review
        (x_small, dict(kernel_size=7, stride=4, dilation=1, padding="corner")),
        (x_small, dict(kernel_size=7, stride=4, dilation=1, padding="same")),
        # pad_h only -> lane-dense flattened Pallas kernel
        (x_small, dict(kernel_size=(7, 1), stride=(4, 1), dilation=1, padding="corner")),
        (x_small, dict(kernel_size=(7, 1), stride=(4, 1), dilation=1, padding="same")),
        # pad_h and pad_w with out_w >= 128 -> spatial Pallas kernel
        (x_wide, dict(kernel_size=7, stride=4, dilation=1, padding="corner")),
        (x_wide, dict(kernel_size=7, stride=4, dilation=1, padding="same")),
    ]

    for xin, cfg in cases:
        out = jax.block_until_ready(adaptive_padding(xin, **cfg))
        ref = adaptive_padding_ref(xin, **cfg)
        assert out.shape == ref.shape, (cfg, out.shape, ref.shape)
        assert out.dtype == ref.dtype, (cfg, out.dtype, ref.dtype)
        assert jnp.array_equal(out, ref), f"value mismatch for cfg {cfg}"

    print("KERNEL_OK")
</pallas_src>

<mosaic_0001>
module attributes {stable_mosaic.version = 11 : i64} {
  func.func @_pad_rows_flat_kernel(%arg0: i32, %arg1: memref<8x256xf32, #tpu.memory_space<vmem>>, %arg2: memref<8x304xf32, #tpu.memory_space<vmem>>) attributes {dimension_semantics = [#tpu.dimension_semantics<parallel>], iteration_bounds = array<i64: 1>, scalar_prefetch = 0 : i64, scratch_operands = 0 : i64, tpu.core_type = #tpu.core_type<tc>, window_params = [{transform_indices = @transform_0, window_bounds = array<i64: 8, 256>}, {transform_indices = @transform_1, window_bounds = array<i64: 8, 304>}]} {
    %c0 = arith.constant 0 : index
    %c0_0 = arith.constant 0 : index
    %0 = vector.load %arg1[%c0, %c0_0] : memref<8x256xf32, #tpu.memory_space<vmem>>, vector<8x256xf32>
    %c0_1 = arith.constant 0 : index
    %c0_2 = arith.constant 0 : index
    %1 = vector.load %arg2[%c0_1, %c0_2] : memref<8x304xf32, #tpu.memory_space<vmem>>, vector<8x256xf32>
    tpu.vector_store %arg2[%c0_1, %c0_2], %0 {strides = array<i32>} : memref<8x304xf32, #tpu.memory_space<vmem>>, vector<8x256xf32>,
    %cst = arith.constant 0.000000e+00 : f32
    %2 = vector.broadcast %cst : f32 to vector<8x48xf32>
    %c0_3 = arith.constant 0 : index
    %c256 = arith.constant 256 : index
    %3 = vector.load %arg2[%c0_3, %c256] : memref<8x304xf32, #tpu.memory_space<vmem>>, vector<8x48xf32>
    tpu.vector_store %arg2[%c0_3, %c256], %2 {strides = array<i32>} : memref<8x304xf32, #tpu.memory_space<vmem>>, vector<8x48xf32>,
    return
  }
  func.func @transform_0(%arg0: i32) -> (i32, i32) {
    %c0_i32 = arith.constant 0 : i32
    %c0_i32_0 = arith.constant 0 : i32
    return %arg0, %c0_i32 : i32, i32
  }
  func.func @transform_1(%arg0: i32) -> (i32, i32) {
    %c0_i32 = arith.constant 0 : i32
    %c0_i32_0 = arith.constant 0 : i32
    return %arg0, %c0_i32 : i32, i32
  }
}

</mosaic_0001>

<llo_original>
// kernel: tpu_custom_call.1
$region0: #{tpu_custom_call.1}
  #allocation0 [shape = 'u32[]', space=smem, size = 0x4, offset = 0x4, fixed_abs, tag = 'smem constant byte address 0x4 - core index']
  #allocation1 [shape = 'u32[72,128]{1,0:T(1,128)}', space=vmem, size = 0x9000, scoped, tag = 'internal scratch']
  %s0 = inlined_call_operand.hbm [shape: f32[8,256], index: 0, kind: input, shape index: {}]
  %s1 = inlined_call_operand.hbm [shape: f32[8,304], index: 1, kind: output, shape index: {}]
  %s2 = sld [smem:[#allocation0]]
  $region18: #{tpu_custom_call.1} parent=0
    _
  %s4 = ssub.s32 1, %s2
  %s5 = scalar_select 0, %s4, %s2
  $region1: #{tpu_custom_call.1} parent=0
    #allocation2 [shape = 'u8[8192]{0}', space=vmem, size = 0x2000, scoped, tag = 'input window, operand 0, single buffered']
    #allocation3 [shape = 's32[1]{0}', space=sflag, size = 0x4, scoped, tag = 'scoped memory for tpu_custom_call.1']
    #allocation4 [shape = 's32[1]{0}', space=sflag, size = 0x4, scoped, tag = 'scoped memory for tpu_custom_call.1']
    #allocation5 [shape = 'u8[12288]{0}', space=vmem, size = 0x3000, scoped, tag = 'output window, operand 0, single buffered']
    %6 = vsyncpa [#allocation3], 0
    %7 = vsyncpa [#allocation4], 0
    // Predicated region
    $region2: #{tpu_custom_call.1} parent=1 // pred_check
      _
    $region3: #{tpu_custom_call.1} parent=1 // pred_check_branch
      %9 = sbr.rel (0) target = $region5
    $region4: #{tpu_custom_call.1} parent=1 // pred_region
      %11 = vsyncadd [#allocation3], 0
      %s13 = sshll.u32 %s0, 4
      %s14 = int_to_ptr.hbm [resolvable:$true] %s13
      %s15 = sshll.u32 [#allocation2], 4
      %s16 = int_to_ptr.vmem [resolvable:$true] %s15
      %18 = dma.hbm_to_vmem [thread:$0]  %s14, 256, %s16, [#allocation3]
    $region5: #{tpu_custom_call.1} parent=1 // pred_fallthru
      _
    // Predicated region
    $region6: #{tpu_custom_call.1} parent=1 // pred_check
      _
    $region7: #{tpu_custom_call.1} parent=1 // pred_check_branch
      %20 = sbr.rel (0) target = $region9
    $region8: #{tpu_custom_call.1} parent=1 // pred_region
      %22 = dma.done [#allocation3], 256
    $region9: #{tpu_custom_call.1} parent=1 // pred_fallthru
      _
    %v23 = vld [vmem:[#allocation2] sm:$0xff]
    %v24 = vld [vmem:[#allocation2 + $0x8] sm:$0xff]
    %25 = vst [vmem:[#allocation5] sm:$0xff] %v23
    %26 = vst [vmem:[#allocation5 + $0x8] sm:$0xff] %v24
    %vm27 = vcmask 392192
    %28 = vst.msk [vmem:[#allocation5 + $0x10] sm:$0xff] %vm27, 0.0
    // Predicated region
    $region10: #{tpu_custom_call.1} parent=1 // pred_check
      _
    $region11: #{tpu_custom_call.1} parent=1 // pred_check_branch
      %30 = sbr.rel (0) target = $region13
    $region12: #{tpu_custom_call.1} parent=1 // pred_region
      %32 = vsyncadd [#allocation4], 0
      %s34 = sshll.u32 [#allocation5], 4
      %s35 = int_to_ptr.vmem [resolvable:$true] %s34
      %s36 = sshll.u32 %s1, 4
      %s37 = int_to_ptr.hbm [resolvable:$true] %s36
      %39 = dma.vmem_to_hbm [thread:$0]  %s35, 384, %s37, [#allocation4]
    $region13: #{tpu_custom_call.1} parent=1 // pred_fallthru
      _
    // Predicated region
    $region14: #{tpu_custom_call.1} parent=1 // pred_check
      _
    $region15: #{tpu_custom_call.1} parent=1 // pred_check_branch
      %41 = sbr.rel (0) target = $region17
    $region16: #{tpu_custom_call.1} parent=1 // pred_region
      %43 = dma.done [#allocation4], 384
    $region17: #{tpu_custom_call.1} parent=1 // pred_fallthru
      _
    %44 = vsyncpa [#allocation3], 1
    %45 = vsyncpa [#allocation4], 1

</llo_original>
